<compile_context>
chip_gen: v7x
topology: tpu7x:2x2x1
jax: 0.10.0
libtpu: 0.0.40
codegen_flags: <defaults>
</compile_context>

<pallas_src>
import jax
import jax.numpy as jnp
from jax import lax
from jax.experimental import pallas as pl
from jax.experimental.pallas import tpu as pltpu


def _round_up(x: int, m: int) -> int:
    return ((x + m - 1) // m) * m


def _shrink(t: int, align: int, floor: int) -> int:
    """Halve a tile size, keeping it aligned and >= floor (no-op if already minimal)."""
    t2 = max(floor, (t // 2 // align) * align)
    return t2 if 0 < t2 < t else t


def _fit_tiles_to_vmem(tm, tn, tk, in_itemsize, needs_acc_scratch, budget_bytes):
    """Shrink (tk, then tn, then tm) until the double-buffered working set fits."""
    def usage(tm_, tn_, tk_):
        bufs = 2 * (tm_ * tk_ + tn_ * tk_) * in_itemsize   # x + w, double-buffered
        bufs += 2 * tm_ * tn_ * 4                           # out (conservatively f32)
        if needs_acc_scratch:
            bufs += tm_ * tn_ * 4                           # f32 accumulator scratch
        return bufs

    # Shrink order: K first (cheapest — just more accumulate steps), then N, then M.
    while usage(tm, tn, tk) > budget_bytes:
        new = _shrink(tk, 128, 512)
        if new != tk:
            tk = new
            continue
        new = _shrink(tn, 128, 256)
        if new != tn:
            tn = new
            continue
        new = _shrink(tm, 8, 128)
        if new != tm:
            tm = new
            continue
        break  # already at the floor everywhere; let the compiler decide
    return tm, tn, tk


def _lm_head_kernel_inplace(x_ref, w_ref, o_ref):
    """f32-output path: accumulate directly into the resident output block."""
    @pl.when(pl.program_id(2) == 0)
    def _():
        o_ref[...] = jnp.zeros_like(o_ref)

    # x: (tm, tk), w: (tn, tk) in native nn.Linear layout -> contract both dim 1.
    o_ref[...] += lax.dot_general(
        x_ref[...],
        w_ref[...],
        dimension_numbers=(((1,), (1,)), ((), ())),
        preferred_element_type=jnp.float32,
    )


def _lm_head_kernel_acc(x_ref, w_ref, o_ref, acc_ref):
    """Generic path: f32 scratch accumulator, cast to output dtype on last K step."""
    @pl.when(pl.program_id(2) == 0)
    def _():
        acc_ref[...] = jnp.zeros_like(acc_ref)

    acc_ref[...] += lax.dot_general(
        x_ref[...],
        w_ref[...],
        dimension_numbers=(((1,), (1,)), ((), ())),
        preferred_element_type=jnp.float32,
    )

    @pl.when(pl.program_id(2) == pl.num_programs(2) - 1)
    def _():
        o_ref[...] = acc_ref[...].astype(o_ref.dtype)


def prediction_head_forward(
    hidden_states,
    decoder_weight,
    *,
    tm=None,
    tn=None,
    tk=None,
    out_dtype=None,
    compute_dtype=None,
    vmem_limit_bytes=48 * 1024 * 1024,  # fits v7x (64 MiB phys) and v5e/v6e (128 MiB)
):
    """hidden_states: (..., hidden_size); decoder_weight: (vocab_size, hidden_size).

    Returns logits of shape (..., vocab_size), same as ProtLlamaPredictionHead.forward.
    `compute_dtype=jnp.bfloat16` can be passed to feed the MXU bf16 operands
    (accumulation stays f32); by default the input dtype is preserved.
    """
    *lead, K = hidden_states.shape
    N, K_w = decoder_weight.shape
    assert K == K_w, "hidden_size mismatch between activations and decoder weight"

    out_dtype = jnp.dtype(out_dtype) if out_dtype is not None else hidden_states.dtype

    x = hidden_states.reshape(-1, K)
    M = x.shape[0]
    w = decoder_weight  # native (N, K) layout — never transposed

    if compute_dtype is not None:
        x = x.astype(compute_dtype)
        w = w.astype(compute_dtype)

    # Tile defaults: tm multiple of 8, tn/tk multiples of 128 (MXU-friendly),
    # clamped so small problems become single full-extent blocks.
    tm = tm or min(512, _round_up(M, 8))
    tn = tn or min(1024, _round_up(N, 128))
    tk = tk or min(1024, _round_up(K, 128))

    accumulate_in_out = out_dtype == jnp.dtype(jnp.float32)

    # Keep the double-buffered working set inside ~80% of the scoped VMEM budget.
    tm, tn, tk = _fit_tiles_to_vmem(
        tm, tn, tk,
        in_itemsize=x.dtype.itemsize,
        needs_acc_scratch=not accumulate_in_out,
        budget_bytes=int(0.8 * vmem_limit_bytes),
    )

    Mp, Np, Kp = _round_up(M, tm), _round_up(N, tn), _round_up(K, tk)
    if (Mp, Kp) != (M, K):
        x = jnp.pad(x, ((0, Mp - M), (0, Kp - K)))
    if (Np, Kp) != (N, K):
        w = jnp.pad(w, ((0, Np - N), (0, Kp - K)))

    grid = (Mp // tm, Np // tn, Kp // tk)

    if accumulate_in_out:
        kernel = _lm_head_kernel_inplace
        scratch_shapes = []
    else:
        kernel = _lm_head_kernel_acc
        scratch_shapes = [pltpu.VMEM((tm, tn), jnp.float32)]

    cost = pl.CostEstimate(
        flops=2 * M * N * K,
        transcendentals=0,
        bytes_accessed=(
            x.dtype.itemsize * M * K
            + w.dtype.itemsize * N * K
            + out_dtype.itemsize * M * N
        ),
    )

    # TODO(synk): if profiling on v5e shows exposed weight DMA, switch the weight
    # BlockSpec to pipeline_mode=pl.Buffered(3).
    out = pl.pallas_call(
        kernel,
        out_shape=jax.ShapeDtypeStruct((Mp, Np), out_dtype),
        grid_spec=pltpu.PrefetchScalarGridSpec(
            num_scalar_prefetch=0,
            grid=grid,
            in_specs=[
                pl.BlockSpec((tm, tk), lambda i, j, k: (i, k)),   # activations (M, K)
                pl.BlockSpec((tn, tk), lambda i, j, k: (j, k)),   # weight (N, K), native layout
            ],
            out_specs=pl.BlockSpec((tm, tn), lambda i, j, k: (i, j)),
            scratch_shapes=scratch_shapes,
        ),
        compiler_params=pltpu.CompilerParams(
            dimension_semantics=("parallel", "parallel", "arbitrary"),
            vmem_limit_bytes=vmem_limit_bytes,
        ),
        cost_estimate=cost,
    )(x, w)

    if (Mp, Np) != (M, N):
        out = out[:M, :N]
    return out.reshape(*lead, N)


if __name__ == "__main__":
    # Small shapes consistent with the module: (batch, seq, hidden) -> (batch, seq, vocab)
    batch, seq, hidden_size, vocab_size = 2, 8, 32, 128

    key = jax.random.PRNGKey(0)
    k_x, k_w = jax.random.split(key)

    hidden_states = jax.random.normal(k_x, (batch, seq, hidden_size), dtype=jnp.float32)
    # nn.Linear(hidden_size, vocab_size, bias=False) weight: shape (vocab, hidden), as in PyTorch.
    decoder_weight = (
        jax.random.normal(k_w, (vocab_size, hidden_size), dtype=jnp.float32)
        * (hidden_size ** -0.5)
    )

    logits = prediction_head_forward(hidden_states, decoder_weight)
    logits = jax.block_until_ready(logits)

    # Reference check against plain JAX (x @ W^T).
    ref = hidden_states @ decoder_weight.T
    assert logits.shape == (batch, seq, vocab_size)
    assert jnp.allclose(logits, ref, atol=1e-4, rtol=1e-4)

    print("KERNEL_OK")
</pallas_src>

<mosaic_0001>
module attributes {stable_mosaic.version = 11 : i64} {
  func.func @_lm_head_kernel_inplace(%arg0: i32, %arg1: i32, %arg2: i32, %arg3: memref<16x128xf32, #tpu.memory_space<vmem>>, %arg4: memref<128x128xf32, #tpu.memory_space<vmem>>, %arg5: memref<16x128xf32, #tpu.memory_space<vmem>>) attributes {dimension_semantics = [#tpu.dimension_semantics<parallel>, #tpu.dimension_semantics<parallel>, #tpu.dimension_semantics<arbitrary>], iteration_bounds = array<i64: 1, 1, 1>, scalar_prefetch = 0 : i64, scratch_operands = 0 : i64, tpu.core_type = #tpu.core_type<tc>, window_params = [{transform_indices = @transform_0, window_bounds = array<i64: 16, 128>}, {transform_indices = @transform_1, window_bounds = array<i64: 128, 128>}, {transform_indices = @transform_2, window_bounds = array<i64: 16, 128>}]} {
    %c0_i32 = arith.constant 0 : i32
    %0 = arith.cmpi eq, %arg2, %c0_i32 : i32
    %1 = arith.extui %0 : i1 to i32
    %c0_i32_0 = arith.constant 0 : i32
    %2 = arith.cmpi ne, %1, %c0_i32_0 : i32
    scf.if %2 {
      %cst_8 = arith.constant 0.000000e+00 : f32
      %9 = vector.broadcast %cst_8 : f32 to vector<16x128xf32>
      %c0_9 = arith.constant 0 : index
      %c0_10 = arith.constant 0 : index
      %10 = vector.load %arg5[%c0_9, %c0_10] : memref<16x128xf32, #tpu.memory_space<vmem>>, vector<16x128xf32>
      tpu.vector_store %arg5[%c0_9, %c0_10], %9 {strides = array<i32>} : memref<16x128xf32, #tpu.memory_space<vmem>>, vector<16x128xf32>,
    } else {
    }
    %c0 = arith.constant 0 : index
    %c0_1 = arith.constant 0 : index
    %3 = vector.load %arg5[%c0, %c0_1] : memref<16x128xf32, #tpu.memory_space<vmem>>, vector<16x128xf32>
    %c0_2 = arith.constant 0 : index
    %c0_3 = arith.constant 0 : index
    %4 = vector.load %arg3[%c0_2, %c0_3] : memref<16x128xf32, #tpu.memory_space<vmem>>, vector<16x128xf32>
    %c0_4 = arith.constant 0 : index
    %c0_5 = arith.constant 0 : index
    %5 = vector.load %arg4[%c0_4, %c0_5] : memref<128x128xf32, #tpu.memory_space<vmem>>, vector<128x128xf32>
    %cst = arith.constant dense<0.000000e+00> : vector<16x128xf32>
    %6 = tpu.matmul %4, %5, %cst {dimension_numbers = #tpu.dot_dimension_numbers<[1], [1], [0], [0], [0, 0, 1, 0], [], []>} : vector<16x128xf32>, vector<128x128xf32>, vector<16x128xf32> -> vector<16x128xf32>
    %7 = arith.addf %3, %6 : vector<16x128xf32>
    %c0_6 = arith.constant 0 : index
    %c0_7 = arith.constant 0 : index
    %8 = vector.load %arg5[%c0_6, %c0_7] : memref<16x128xf32, #tpu.memory_space<vmem>>, vector<16x128xf32>
    tpu.vector_store %arg5[%c0_6, %c0_7], %7 {strides = array<i32>} : memref<16x128xf32, #tpu.memory_space<vmem>>, vector<16x128xf32>,
    return
  }
  func.func @transform_0(%arg0: i32, %arg1: i32, %arg2: i32) -> (i32, i32) {
    %c0_i32 = arith.constant 0 : i32
    return %arg0, %arg2 : i32, i32
  }
  func.func @transform_1(%arg0: i32, %arg1: i32, %arg2: i32) -> (i32, i32) {
    %c0_i32 = arith.constant 0 : i32
    return %arg1, %arg2 : i32, i32
  }
  func.func @transform_2(%arg0: i32, %arg1: i32, %arg2: i32) -> (i32, i32) {
    %c0_i32 = arith.constant 0 : i32
    return %arg0, %arg1 : i32, i32
  }
}

</mosaic_0001>

<llo_original>
// kernel: tpu_custom_call.1
$region0: #{tpu_custom_call.1}
  #allocation0 [shape = 'u32[]', space=smem, size = 0x4, offset = 0x4, fixed_abs, tag = 'smem constant byte address 0x4 - core index']
  #allocation1 [shape = 'u32[144,128]{1,0:T(1,128)}', space=vmem, size = 0x12000, scoped, tag = 'internal scratch']
  %s0 = inlined_call_operand.hbm [shape: f32[16,128], index: 0, kind: input, shape index: {}]
  %s1 = inlined_call_operand.hbm [shape: f32[128,128], index: 1, kind: input, shape index: {}]
  %s2 = inlined_call_operand.hbm [shape: f32[16,128], index: 2, kind: output, shape index: {}]
  %s3 = sld [smem:[#allocation0]]
  $region30: #{tpu_custom_call.1} parent=0
    _
  %s5 = ssub.s32 1, %s3
  %s6 = scalar_select 0, %s5, %s3
  $region1: #{tpu_custom_call.1} parent=0
    #allocation2 [shape = 'u8[8192]{0}', space=vmem, size = 0x2000, scoped, tag = 'input window, operand 0, single buffered']
    #allocation3 [shape = 's32[1]{0}', space=sflag, size = 0x4, scoped, tag = 'scoped memory for tpu_custom_call.1']
    #allocation4 [shape = 's32[1]{0}', space=sflag, size = 0x4, scoped, tag = 'scoped memory for tpu_custom_call.1']
    #allocation5 [shape = 'u8[65536]{0}', space=vmem, size = 0x10000, scoped, tag = 'input window, operand 1, single buffered']
    #allocation6 [shape = 's32[1]{0}', space=sflag, size = 0x4, scoped, tag = 'scoped memory for tpu_custom_call.1']
    #allocation7 [shape = 'u8[8192]{0}', space=vmem, size = 0x2000, scoped, tag = 'output window, operand 0, single buffered']
    %7 = vsyncpa [#allocation3], 0
    %8 = vsyncpa [#allocation6], 0
    %9 = vsyncpa [#allocation4], 0
    // Predicated region
    $region2: #{tpu_custom_call.1} parent=1 // pred_check
      _
    $region3: #{tpu_custom_call.1} parent=1 // pred_check_branch
      %11 = sbr.rel (0) target = $region5
    $region4: #{tpu_custom_call.1} parent=1 // pred_region
      %s13 = ssub.s32 256, 256
      %14 = vsyncadd [#allocation3], %s13
      %s15 = sshll.u32 [#allocation2], 4
      %s16 = int_to_ptr.vmem [resolvable:$true] %s15
      %21 = dma.hbm_to_vmem [thread:$0]  %s0, 256, %s16, [#allocation3], 128, 128, 8
    $region5: #{tpu_custom_call.1} parent=1 // pred_fallthru
      _
    // Predicated region
    $region6: #{tpu_custom_call.1} parent=1 // pred_check
      _
    $region7: #{tpu_custom_call.1} parent=1 // pred_check_branch
      %23 = sbr.rel (0) target = $region9
    $region8: #{tpu_custom_call.1} parent=1 // pred_region
      %s25 = ssub.s32 2048, 2048
      %26 = vsyncadd [#allocation6], %s25
      %s27 = sshll.u32 [#allocation5], 4
      %s28 = int_to_ptr.vmem [resolvable:$true] %s27
      %33 = dma.hbm_to_vmem [thread:$0]  %s1, 2048, %s28, [#allocation6], 128, 128, 8
    $region9: #{tpu_custom_call.1} parent=1 // pred_fallthru
      _
    // Predicated region
    $region10: #{tpu_custom_call.1} parent=1 // pred_check
      _
    $region11: #{tpu_custom_call.1} parent=1 // pred_check_branch
      %35 = sbr.rel (0) target = $region13
    $region12: #{tpu_custom_call.1} parent=1 // pred_region
      %36 = dma.done [#allocation3], 256
    $region13: #{tpu_custom_call.1} parent=1 // pred_fallthru
      _
    // Predicated region
    $region14: #{tpu_custom_call.1} parent=1 // pred_check
      _
    $region15: #{tpu_custom_call.1} parent=1 // pred_check_branch
      %38 = sbr.rel (0) target = $region17
    $region16: #{tpu_custom_call.1} parent=1 // pred_region
      %39 = dma.done [#allocation6], 2048
    $region17: #{tpu_custom_call.1} parent=1 // pred_fallthru
      _
    %p40 = scmp.eq.s32.totalorder 0, 0
    // Predicated region
    $region18: #{tpu_custom_call.1} parent=1 // pred_check
      %p41 = pneg %p40
    $region19: #{tpu_custom_call.1} parent=1 // pred_check_branch
      %43 = sbr.rel (%p41) target = $region21
    $region20: #{tpu_custom_call.1} parent=1 // pred_region
      %44 = vst [vmem:[#allocation7] sm:$0xff] 0.0
      %45 = vst [vmem:[#allocation7 + $0x8] sm:$0xff] 0.0
    $region21: #{tpu_custom_call.1} parent=1 // pred_fallthru
      _
    %v46 = vld [vmem:[#allocation7] sm:$0xff]
    %v47 = vld [vmem:[#allocation7 + $0x8] sm:$0xff]
    %v48 = vld [vmem:[#allocation2] sm:$0xff]
    %v49 = vld [vmem:[#allocation2 + $0x8] sm:$0xff]
    %v50 = vld [vmem:[#allocation5] sm:$0xff]
    %v51 = vld [vmem:[#allocation5 + $0x8] sm:$0xff]
    %v52 = vld [vmem:[#allocation5 + $0x10] sm:$0xff]
    %v53 = vld [vmem:[#allocation5 + $0x18] sm:$0xff]
    %v54 = vld [vmem:[#allocation5 + $0x20] sm:$0xff]
    %v55 = vld [vmem:[#allocation5 + $0x28] sm:$0xff]
    %v56 = vld [vmem:[#allocation5 + $0x30] sm:$0xff]
    %v57 = vld [vmem:[#allocation5 + $0x38] sm:$0xff]
    %v58 = vld [vmem:[#allocation5 + $0x40] sm:$0xff]
    %v59 = vld [vmem:[#allocation5 + $0x48] sm:$0xff]
    %v60 = vld [vmem:[#allocation5 + $0x50] sm:$0xff]
    %v61 = vld [vmem:[#allocation5 + $0x58] sm:$0xff]
    %v62 = vld [vmem:[#allocation5 + $0x60] sm:$0xff]
    %v63 = vld [vmem:[#allocation5 + $0x68] sm:$0xff]
    %v64 = vld [vmem:[#allocation5 + $0x70] sm:$0xff]
    %v65 = vld [vmem:[#allocation5 + $0x78] sm:$0xff]
    %66 = vmatprep.subr.mxu0 0.0
    %67 = vmatpush1.xpose.msra.mxu0 %v50
    %68 = vmatprep.subr.mxu0 0.0
    %69 = vmatpush1.xpose.msra.mxu0 %v51
    %70 = vmatprep.subr.mxu0 0.0
    %71 = vmatpush1.xpose.msra.mxu0 %v52
    %72 = vmatprep.subr.mxu0 0.0
    %73 = vmatpush1.xpose.msra.mxu0 %v53
    %74 = vmatprep.subr.mxu0 0.0
    %75 = vmatpush1.xpose.msra.mxu0 %v54
    %76 = vmatprep.subr.mxu0 0.0
    %77 = vmatpush1.xpose.msra.mxu0 %v55
    %78 = vmatprep.subr.mxu0 0.0
    %79 = vmatpush1.xpose.msra.mxu0 %v56
    %80 = vmatprep.subr.mxu0 0.0
    %81 = vmatpush1.xpose.msra.mxu0 %v57
    %82 = vmatprep.subr.mxu0 0.0
    %83 = vmatpush1.xpose.msra.mxu0 %v58
    %84 = vmatprep.subr.mxu0 0.0
    %85 = vmatpush1.xpose.msra.mxu0 %v59
    %86 = vmatprep.subr.mxu0 0.0
    %87 = vmatpush1.xpose.msra.mxu0 %v60
    %88 = vmatprep.subr.mxu0 0.0
    %89 = vmatpush1.xpose.msra.mxu0 %v61
    %90 = vmatprep.subr.mxu0 0.0
    %91 = vmatpush1.xpose.msra.mxu0 %v62
    %92 = vmatprep.subr.mxu0 0.0
    %93 = vmatpush1.xpose.msra.mxu0 %v63
    %94 = vmatprep.subr.mxu0 0.0
    %95 = vmatpush1.xpose.msra.mxu0 %v64
    %96 = vmatprep.subr.mxu0 0.0
    %97 = vmatpush1.xpose.msra.mxu0 %v65
    %98 = vmatprep.subr.mxu0 0.0
    %99 = vmatpush1.xpose.msra.mxu0 0.0
    %100 = vmatprep.subr.mxu0 0.0
    %101 = vmatpush1.xpose.msra.mxu0 0.0
    %102 = vmatprep.subr.mxu0 0.0
    %103 = vmatpush1.xpose.msra.mxu0 0.0
    %104 = vmatprep.subr.mxu0 0.0
    %105 = vmatpush1.xpose.msra.mxu0 0.0
    %106 = vmatprep.subr.mxu0 0.0
    %107 = vmatpush1.xpose.msra.mxu0 0.0
    %108 = vmatprep.subr.mxu0 0.0
    %109 = vmatpush1.xpose.msra.mxu0 0.0
    %110 = vmatprep.subr.mxu0 0.0
    %111 = vmatpush1.xpose.msra.mxu0 0.0
    %112 = vmatprep.subr.mxu0 0.0
    %113 = vmatpush1.xpose.msra.mxu0 0.0
    %114 = vmatprep.subr.mxu0 0.0
    %115 = vmatpush1.xpose.msra.mxu0 0.0
    %116 = vmatprep.subr.mxu0 0.0
    %117 = vmatpush1.xpose.msra.mxu0 0.0
    %118 = vmatprep.subr.mxu0 0.0
    %119 = vmatpush1.xpose.msra.mxu0 0.0
    %120 = vmatprep.subr.mxu0 0.0
    %121 = vmatpush1.xpose.msra.mxu0 0.0
    %122 = vmatprep.subr.mxu0 0.0
    %123 = vmatpush1.xpose.msra.mxu0 0.0
    %124 = vmatprep.subr.mxu0 0.0
    %125 = vmatpush1.xpose.msra.mxu0 0.0
    %126 = vmatprep.subr.mxu0 0.0
    %127 = vmatpush1.xpose.msra.mxu0 0.0
    %128 = vmatprep.subr.mxu0 0.0
    %129 = vmatpush1.xpose.msra.mxu0 0.0
    %130 = vmatprep.mubr.f32.mxu0 0.0
    %131 = vmatmul.mubr.f32.gmra.mrb[0].mxu0 %v48
    %v132 = vpop.f32.mrb[0].mxu0
    %v133 = vadd.f32 0.0, %v132
    %v134 = vpop.f32.mrb[0].mxu0
    %135 = vmatprep.mubr.f32.mxu0 0.0
    %136 = vmatmul.mubr.f32.gmra.mrb[0].mxu0 %v49
    %v137 = vpop.f32.mrb[0].mxu0
    %v138 = vadd.f32 0.0, %v137
    %v139 = vpop.f32.mrb[0].mxu0
    %140 = vdwg.mxu0
    %v141 = vadd.f32 %v46, %v133
    %v142 = vadd.f32 %v47, %v138
    %143 = vst [vmem:[#allocation7] sm:$0xff] %v141
    %144 = vst [vmem:[#allocation7 + $0x8] sm:$0xff] %v142
    // Predicated region
    $region22: #{tpu_custom_call.1} parent=1 // pred_check
      _
    $region23: #{tpu_custom_call.1} parent=1 // pred_check_branch
      %146 = sbr.rel (0) target = $region25
    $region24: #{tpu_custom_call.1} parent=1 // pred_region
      %s148 = ssub.s32 256, 256
      %149 = vsyncadd [#allocation4], %s148
      %s150 = sshll.u32 [#allocation7], 4
      %s151 = int_to_ptr.vmem [resolvable:$true] %s150
      %156 = dma.vmem_to_hbm [thread:$0]  %s151, 256, %s2, [#allocation4], 128, 128, 8
    $region25: #{tpu_custom_call.1} parent=1 // pred_fallthru
      _
    // Predicated region
    $region26: #{tpu_custom_call.1} parent=1 // pred_check
      _
    $region27: #{tpu_custom_call.1} parent=1 // pred_check_branch
      %158 = sbr.rel (0) target = $region29
    $region28: #{tpu_custom_call.1} parent=1 // pred_region
      %159 = dma.done [#allocation4], 256
    $region29: #{tpu_custom_call.1} parent=1 // pred_fallthru
      _
    %160 = vsyncpa [#allocation3], 1
    %161 = vsyncpa [#allocation6], 1
    %162 = vsyncpa [#allocation4], 1

</llo_original>
